<compile_context>
chip_gen: v5e
topology: v5e:2x2
jax: 0.10.0
libtpu: 0.0.40
codegen_flags: <defaults>
</compile_context>

<pallas_src>
from functools import partial

import jax
import jax.numpy as jnp
from jax.experimental import pallas as pl
from jax.experimental.pallas import tpu as pltpu


def _round_up(x: int, m: int) -> int:
    return (x + m - 1) // m * m


def mlp_kernel(x_ref, w1_ref, b1_ref, w2_ref, b2_ref, o_ref):
    # x_ref: (TB, D) f32, w1_ref: (D, H) bf16, b1_ref: (1, H) f32,
    # w2_ref: (H, Cp) bf16, b2_ref: (1, Cp) f32, o_ref: (TB, Cp) f32.
    x = x_ref[...].astype(jnp.bfloat16)                    # in-kernel cast: VPU work under MXU/DMA slack
    h = jnp.dot(x, w1_ref[...],
                preferred_element_type=jnp.float32)        # (TB, H) f32 accum on MXU
    h = (h + b1_ref[...]).astype(jnp.bfloat16)             # f32 bias add, pack to bf16 for 2nd MXU pass
    y = jnp.dot(h, w2_ref[...],
                preferred_element_type=jnp.float32)        # (TB, Cp) f32 accum
    o_ref[...] = y + b2_ref[...]                           # lane-dense (Cp = 128k) unmasked store


def prepare_params(w1, b1, w2, b2):
    """One-time weight prep: bf16 cast + pad only the narrow nclasses dim to 128.

    w1: (D, H) f32, b1: (H,) f32, w2: (H, C) f32, b2: (C,) f32.
    Returns VMEM-friendly arrays reused by every forward call.
    """
    D, H = w1.shape
    C = w2.shape[1]
    Cp = _round_up(C, 128)
    w1b = w1.astype(jnp.bfloat16)                                   # (D, H)
    b1p = b1.astype(jnp.float32).reshape(1, H)                      # (1, H)
    w2b = jnp.zeros((H, Cp), jnp.bfloat16).at[:, :C].set(w2.astype(jnp.bfloat16))
    b2p = jnp.zeros((1, Cp), jnp.float32).at[:, :C].set(b2.astype(jnp.float32))
    return w1b, b1p, w2b, b2p


def _pick_block_b(B: int) -> int:
    # Small batch: one grid step, sublane-aligned (8) only -> no per-step
    # overhead, no wasted MXU rows / DMA for tiny inference batches.
    # Large batch: 512-row tiles (best measured fraction of HBM roofline).
    if B <= 512:
        return _round_up(B, 8)
    return 512


@partial(jax.jit, static_argnames=("nclasses",))
def mlp_forward(x, w1b, b1p, w2b, b2p, *, nclasses):
    """x: (B, D) f32; prepared params from prepare_params(). Returns (B, nclasses) f32."""
    B, D = x.shape
    H = w1b.shape[1]
    Cp = w2b.shape[1]

    block_b = _pick_block_b(B)
    steps = pl.cdiv(B, block_b)

    flops = 2 * B * (D * H + H * Cp)
    bytes_accessed = (B * D * 4 + w1b.size * 2 + w2b.size * 2
                      + b1p.size * 4 + b2p.size * 4 + B * Cp * 4)

    out = pl.pallas_call(
        mlp_kernel,
        out_shape=jax.ShapeDtypeStruct((B, Cp), jnp.float32),
        grid=(steps,),
        in_specs=[
            # x: one (possibly ragged) batch tile per grid step, double-buffered.
            # Last dim = full D satisfies the lane rule without padding.
            pl.BlockSpec((block_b, D), lambda i: (i, 0)),
            # Weights/biases: same block every step -> DMA'd once, VMEM-resident.
            pl.BlockSpec((D, H), lambda i: (0, 0)),
            pl.BlockSpec((1, H), lambda i: (0, 0)),
            pl.BlockSpec((H, Cp), lambda i: (0, 0)),
            pl.BlockSpec((1, Cp), lambda i: (0, 0)),
        ],
        out_specs=pl.BlockSpec((block_b, Cp), lambda i: (i, 0)),
        compiler_params=pltpu.CompilerParams(
            # Megacore-shard the batch axis only when there is real work to
            # split; a 1-step grid would just duplicate the weight DMA on v7x.
            dimension_semantics=(("parallel",) if steps > 1 else ("arbitrary",)),
            # VMEM use is a few MiB even at block_b=512 (f32 x tile + bf16
            # weights), well under the default scoped limit on all generations.
        ),
        cost_estimate=pl.CostEstimate(
            flops=flops, transcendentals=0, bytes_accessed=bytes_accessed),
    )(x, w1b, b1p, w2b, b2p)

    return out[:, :nclasses]


def init_params(key, input_size, hidden, nclasses):
    """Deterministic init mimicking nn.Linear default (uniform +/- 1/sqrt(fan_in)).
    Weights are stored transposed: (in_features, out_features)."""
    k1, k2, k3, k4 = jax.random.split(key, 4)
    bound1 = 1.0 / jnp.sqrt(input_size)
    bound2 = 1.0 / jnp.sqrt(hidden)
    w1 = jax.random.uniform(k1, (input_size, hidden), jnp.float32, -bound1, bound1)
    b1 = jax.random.uniform(k2, (hidden,), jnp.float32, -bound1, bound1)
    w2 = jax.random.uniform(k3, (hidden, nclasses), jnp.float32, -bound2, bound2)
    b2 = jax.random.uniform(k4, (nclasses,), jnp.float32, -bound2, bound2)
    return w1, b1, w2, b2


if __name__ == "__main__":
    key = jax.random.PRNGKey(0)
    k_x, k_p = jax.random.split(key)

    B = 16             # small batch (single grid step, sublane-aligned)
    INPUT_SIZE = 64    # small input_size for the demo
    HIDDEN = 512       # fixed by the module
    NCLASSES = 10      # padded to 128 lanes once in prepare_params, sliced back

    x = jax.random.normal(k_x, (B, INPUT_SIZE), jnp.float32)
    w1, b1, w2, b2 = init_params(k_p, INPUT_SIZE, HIDDEN, NCLASSES)

    # One-time weight prep (pad + bf16 cast hoisted out of the per-call path).
    w1b, b1p, w2b, b2p = prepare_params(w1, b1, w2, b2)
    w1b, b1p, w2b, b2p = jax.block_until_ready((w1b, b1p, w2b, b2p))

    out = mlp_forward(x, w1b, b1p, w2b, b2p, nclasses=NCLASSES)
    out = jax.block_until_ready(out)
    assert out.shape == (B, NCLASSES)

    # Reference with the same bf16-operand / f32-accumulate math as the kernel.
    xb16, w1b16, w2b16 = (a.astype(jnp.bfloat16) for a in (x, w1, w2))
    h_ref = jnp.dot(xb16, w1b16, preferred_element_type=jnp.float32) + b1
    ref = jnp.dot(h_ref.astype(jnp.bfloat16), w2b16,
                  preferred_element_type=jnp.float32) + b2
    assert jnp.allclose(out, ref, atol=1e-2, rtol=1e-2)

    # Loose sanity check against full-f32 math (bf16 operands are the perf tradeoff).
    ref_f32 = (x @ w1 + b1) @ w2 + b2
    assert jnp.allclose(out, ref_f32, atol=5e-2, rtol=5e-2)

    print("KERNEL_OK")
</pallas_src>

<mosaic_0001>
module attributes {stable_mosaic.version = 11 : i64} {
  func.func @mlp_kernel(%arg0: i32, %arg1: memref<16x64xf32, #tpu.memory_space<vmem>>, %arg2: memref<64x512xbf16, #tpu.memory_space<vmem>>, %arg3: memref<1x512xf32, #tpu.memory_space<vmem>>, %arg4: memref<512x128xbf16, #tpu.memory_space<vmem>>, %arg5: memref<1x128xf32, #tpu.memory_space<vmem>>, %arg6: memref<16x128xf32, #tpu.memory_space<vmem>>) attributes {dimension_semantics = [#tpu.dimension_semantics<arbitrary>], iteration_bounds = array<i64: 1>, scalar_prefetch = 0 : i64, scratch_operands = 0 : i64, tpu.core_type = #tpu.core_type<tc>, window_params = [{transform_indices = @transform_0, window_bounds = array<i64: 16, 64>}, {pipeline_mode = #tpu.pipeline_mode<synchronous>, transform_indices = @transform_1, window_bounds = array<i64: 64, 512>}, {pipeline_mode = #tpu.pipeline_mode<synchronous>, transform_indices = @transform_2, window_bounds = array<i64: 1, 512>}, {pipeline_mode = #tpu.pipeline_mode<synchronous>, transform_indices = @transform_3, window_bounds = array<i64: 512, 128>}, {pipeline_mode = #tpu.pipeline_mode<synchronous>, transform_indices = @transform_4, window_bounds = array<i64: 1, 128>}, {transform_indices = @transform_5, window_bounds = array<i64: 16, 128>}]} {
    %c0 = arith.constant 0 : index
    %c0_0 = arith.constant 0 : index
    %0 = vector.load %arg1[%c0, %c0_0] : memref<16x64xf32, #tpu.memory_space<vmem>>, vector<16x64xf32>
    %1 = arith.truncf %0 : vector<16x64xf32> to vector<16x64xbf16>
    %c0_1 = arith.constant 0 : index
    %c0_2 = arith.constant 0 : index
    %2 = vector.load %arg2[%c0_1, %c0_2] : memref<64x512xbf16, #tpu.memory_space<vmem>>, vector<64x512xbf16>
    %cst = arith.constant dense<0.000000e+00> : vector<16x512xf32>
    %3 = tpu.matmul %1, %2, %cst {dimension_numbers = #tpu.dot_dimension_numbers<[1], [0], [0], [1], [0, 0, 1, 1], [], []>} : vector<16x64xbf16>, vector<64x512xbf16>, vector<16x512xf32> -> vector<16x512xf32>
    %c0_3 = arith.constant 0 : index
    %c0_4 = arith.constant 0 : index
    %4 = vector.load %arg3[%c0_3, %c0_4] : memref<1x512xf32, #tpu.memory_space<vmem>>, vector<1x512xf32>
    %5 = vector.broadcast %4 : vector<1x512xf32> to vector<16x512xf32>
    %6 = arith.addf %3, %5 : vector<16x512xf32>
    %7 = arith.truncf %6 : vector<16x512xf32> to vector<16x512xbf16>
    %c0_5 = arith.constant 0 : index
    %c0_6 = arith.constant 0 : index
    %8 = vector.load %arg4[%c0_5, %c0_6] : memref<512x128xbf16, #tpu.memory_space<vmem>>, vector<512x128xbf16>
    %cst_7 = arith.constant dense<0.000000e+00> : vector<16x128xf32>
    %9 = tpu.matmul %7, %8, %cst_7 {dimension_numbers = #tpu.dot_dimension_numbers<[1], [0], [0], [1], [0, 0, 1, 1], [], []>} : vector<16x512xbf16>, vector<512x128xbf16>, vector<16x128xf32> -> vector<16x128xf32>
    %c0_8 = arith.constant 0 : index
    %c0_9 = arith.constant 0 : index
    %10 = vector.load %arg5[%c0_8, %c0_9] : memref<1x128xf32, #tpu.memory_space<vmem>>, vector<1x128xf32>
    %11 = vector.broadcast %10 : vector<1x128xf32> to vector<16x128xf32>
    %12 = arith.addf %9, %11 : vector<16x128xf32>
    %c0_10 = arith.constant 0 : index
    %c0_11 = arith.constant 0 : index
    %13 = vector.load %arg6[%c0_10, %c0_11] : memref<16x128xf32, #tpu.memory_space<vmem>>, vector<16x128xf32>
    tpu.vector_store %arg6[%c0_10, %c0_11], %12 {strides = array<i32>} : memref<16x128xf32, #tpu.memory_space<vmem>>, vector<16x128xf32>,
    return
  }
  func.func @transform_0(%arg0: i32) -> (i32, i32) {
    %c0_i32 = arith.constant 0 : i32
    %c0_i32_0 = arith.constant 0 : i32
    return %arg0, %c0_i32 : i32, i32
  }
  func.func @transform_1(%arg0: i32) -> (i32, i32) {
    %c0_i32 = arith.constant 0 : i32
    %c0_i32_0 = arith.constant 0 : i32
    %c0_i32_1 = arith.constant 0 : i32
    return %c0_i32, %c0_i32_0 : i32, i32
  }
  func.func @transform_2(%arg0: i32) -> (i32, i32) {
    %c0_i32 = arith.constant 0 : i32
    %c0_i32_0 = arith.constant 0 : i32
    %c0_i32_1 = arith.constant 0 : i32
    return %c0_i32, %c0_i32_0 : i32, i32
  }
  func.func @transform_3(%arg0: i32) -> (i32, i32) {
    %c0_i32 = arith.constant 0 : i32
    %c0_i32_0 = arith.constant 0 : i32
    %c0_i32_1 = arith.constant 0 : i32
    return %c0_i32, %c0_i32_0 : i32, i32
  }
  func.func @transform_4(%arg0: i32) -> (i32, i32) {
    %c0_i32 = arith.constant 0 : i32
    %c0_i32_0 = arith.constant 0 : i32
    %c0_i32_1 = arith.constant 0 : i32
    return %c0_i32, %c0_i32_0 : i32, i32
  }
  func.func @transform_5(%arg0: i32) -> (i32, i32) {
    %c0_i32 = arith.constant 0 : i32
    %c0_i32_0 = arith.constant 0 : i32
    return %arg0, %c0_i32 : i32, i32
  }
}

</mosaic_0001>

<llo_original>
// kernel: mlp_forward.1
$region0: #{mlp_forward.1}
  #allocation0 [shape = 'u32[]', space=smem, size = 0x4, offset = 0x4, fixed_abs, tag = 'smem constant byte address 0x4 - core index']
  #allocation1 [shape = 'u32[72,128]{1,0:T(1,128)}', space=vmem, size = 0x9000, scoped, tag = 'internal scratch']
  %s0 = inlined_call_operand.hbm [shape: f32[16,64], index: 0, kind: input, shape index: {}]
  %s1 = inlined_call_operand.hbm [shape: bf16[64,512], index: 1, kind: input, shape index: {}]
  %s2 = inlined_call_operand.hbm [shape: f32[1,512], index: 2, kind: input, shape index: {}]
  %s3 = inlined_call_operand.hbm [shape: bf16[512,128], index: 3, kind: input, shape index: {}]
  %s4 = inlined_call_operand.vmem [shape: f32[1,128], index: 4, kind: input, shape index: {}]
  %s5 = inlined_call_operand.hbm [shape: f32[16,128], index: 5, kind: output, shape index: {}]
  %s6 = sld [smem:[#allocation0]]
  $region46: #{mlp_forward.1} parent=0
    _
  %s8 = ssub.s32 1, %s6
  %s9 = scalar_select 0, %s8, %s6
  $region1: #{mlp_forward.1} parent=0
    #allocation2 [shape = 'u8[8192]{0}', space=vmem, size = 0x2000, scoped, tag = 'input window, operand 0, single buffered']
    #allocation3 [shape = 's32[1]{0}', space=sflag, size = 0x4, scoped, tag = 'scoped memory for mlp_forward.1']
    #allocation4 [shape = 's32[1]{0}', space=sflag, size = 0x4, scoped, tag = 'scoped memory for mlp_forward.1']
    #allocation5 [shape = 'u8[65536]{0}', space=vmem, size = 0x10000, scoped, tag = 'input window, operand 1, single buffered']
    #allocation6 [shape = 's32[1]{0}', space=sflag, size = 0x4, scoped, tag = 'scoped memory for mlp_forward.1']
    #allocation7 [shape = 'u8[2048]{0}', space=vmem, size = 0x800, scoped, tag = 'input window, operand 2, single buffered']
    #allocation8 [shape = 'u8[131072]{0}', space=vmem, size = 0x20000, scoped, tag = 'input window, operand 3, single buffered']
    #allocation9 [shape = 's32[1]{0}', space=sflag, size = 0x4, scoped, tag = 'scoped memory for mlp_forward.1']
    #allocation10 [shape = 'u8[8192]{0}', space=vmem, size = 0x2000, scoped, tag = 'output window, operand 0, single buffered']
    %10 = vsyncpa [#allocation3], 0
    %11 = vsyncpa [#allocation6], 0
    %12 = vsyncpa [#allocation9], 0
    %13 = vsyncpa [#allocation4], 0
    // Predicated region
    $region2: #{mlp_forward.1} parent=1 // pred_check
      _
    $region3: #{mlp_forward.1} parent=1 // pred_check_branch
      %15 = sbr.rel (0) target = $region5
    $region4: #{mlp_forward.1} parent=1 // pred_region
      %17 = vsyncadd [#allocation3], 0
      %s18 = sshll.u32 %s0, 4
      %s19 = int_to_ptr.hbm [resolvable:$true] %s18
      %s20 = sshll.u32 [#allocation2], 4
      %s21 = int_to_ptr.vmem [resolvable:$true] %s20
      %26 = dma.hbm_to_vmem [thread:$0]  %s19, 256, %s21, [#allocation3], 128, 128, 8
    $region5: #{mlp_forward.1} parent=1 // pred_fallthru
      _
    // Predicated region
    $region6: #{mlp_forward.1} parent=1 // pred_check
      _
    $region7: #{mlp_forward.1} parent=1 // pred_check_branch
      %28 = sbr.rel (0) target = $region9
    $region8: #{mlp_forward.1} parent=1 // pred_region
      %30 = vsyncadd [#allocation6], 0
      %s31 = sshll.u32 %s1, 4
      %s32 = int_to_ptr.hbm [resolvable:$true] %s31
      %s33 = sshll.u32 [#allocation5], 4
      %s34 = int_to_ptr.vmem [resolvable:$true] %s33
      %39 = dma.hbm_to_vmem [thread:$0]  %s32, 2048, %s34, [#allocation6], 256, 256, 16
    $region9: #{mlp_forward.1} parent=1 // pred_fallthru
      _
    // Predicated region
    $region10: #{mlp_forward.1} parent=1 // pred_check
      _
    $region11: #{mlp_forward.1} parent=1 // pred_check_branch
      %41 = sbr.rel (0) target = $region13
    $region12: #{mlp_forward.1} parent=1 // pred_region
      %43 = vsyncadd [#allocation6], 0
      %s45 = sshll.u32 %s2, 4
      %s46 = int_to_ptr.hbm [resolvable:$true] %s45
      %s47 = sshll.u32 [#allocation7], 4
      %s48 = int_to_ptr.vmem [resolvable:$true] %s47
      %50 = dma.hbm_to_vmem [thread:$0]  %s46, 64, %s48, [#allocation6]
    $region13: #{mlp_forward.1} parent=1 // pred_fallthru
      _
    // Predicated region
    $region14: #{mlp_forward.1} parent=1 // pred_check
      _
    $region15: #{mlp_forward.1} parent=1 // pred_check_branch
      %52 = sbr.rel (0) target = $region17
    $region16: #{mlp_forward.1} parent=1 // pred_region
      %54 = vsyncadd [#allocation9], 0
      %s55 = sshll.u32 %s3, 4
      %s56 = int_to_ptr.hbm [resolvable:$true] %s55
      %s57 = sshll.u32 [#allocation8], 4
      %s58 = int_to_ptr.vmem [resolvable:$true] %s57
      %63 = dma.hbm_to_vmem [thread:$0]  %s56, 4096, %s58, [#allocation9], 64, 64, 4
    $region17: #{mlp_forward.1} parent=1 // pred_fallthru
      _
    // Predicated region
    $region18: #{mlp_forward.1} parent=1 // pred_check
      _
    $region19: #{mlp_forward.1} parent=1 // pred_check_branch
      %65 = sbr.rel (0) target = $region21
    $region20: #{mlp_forward.1} parent=1 // pred_region
      _
    $region21: #{mlp_forward.1} parent=1 // pred_fallthru
      _
    // Predicated region
    $region22: #{mlp_forward.1} parent=1 // pred_check
      _
    $region23: #{mlp_forward.1} parent=1 // pred_check_branch
      %67 = sbr.rel (0) target = $region25
    $region24: #{mlp_forward.1} parent=1 // pred_region
      %69 = dma.done [#allocation3], 256
    $region25: #{mlp_forward.1} parent=1 // pred_fallthru
      _
    // Predicated region
    $region26: #{mlp_forward.1} parent=1 // pred_check
      _
    $region27: #{mlp_forward.1} parent=1 // pred_check_branch
      %71 = sbr.rel (0) target = $region29
    $region28: #{mlp_forward.1} parent=1 // pred_region
      %73 = dma.done [#allocation6], 2048
    $region29: #{mlp_forward.1} parent=1 // pred_fallthru
      _
    // Predicated region
    $region30: #{mlp_forward.1} parent=1 // pred_check
      _
    $region31: #{mlp_forward.1} parent=1 // pred_check_branch
      %75 = sbr.rel (0) target = $region33
    $region32: #{mlp_forward.1} parent=1 // pred_region
      %77 = dma.done [#allocation6], 64
    $region33: #{mlp_forward.1} parent=1 // pred_fallthru
      _
    // Predicated region
    $region34: #{mlp_forward.1} parent=1 // pred_check
      _
    $region35: #{mlp_forward.1} parent=1 // pred_check_branch
      %79 = sbr.rel (0) target = $region37
    $region36: #{mlp_forward.1} parent=1 // pred_region
      %81 = dma.done [#allocation9], 4096
    $region37: #{mlp_forward.1} parent=1 // pred_fallthru
      _
    %v83 = vld [vmem:[#allocation2] sm:$0xff]
    %v84 = vld [vmem:[#allocation2 + $0x8] sm:$0xff]
    %v85 = vpack.c.bf16 %v84, %v83
    %v86 = vld [vmem:[#allocation5] sm:$0xff]
    %v87 = vld [vmem:[#allocation5 + $0x8] sm:$0xff]
    %v88 = vld [vmem:[#allocation5 + $0x10] sm:$0xff]
    %v89 = vld [vmem:[#allocation5 + $0x18] sm:$0xff]
    %v90 = vld [vmem:[#allocation5 + $0x20] sm:$0xff]
    %v91 = vld [vmem:[#allocation5 + $0x28] sm:$0xff]
    %v92 = vld [vmem:[#allocation5 + $0x30] sm:$0xff]
    %v93 = vld [vmem:[#allocation5 + $0x38] sm:$0xff]
    %v94 = vld [vmem:[#allocation5 + $0x40] sm:$0xff]
    %v95 = vld [vmem:[#allocation5 + $0x48] sm:$0xff]
    %v96 = vld [vmem:[#allocation5 + $0x50] sm:$0xff]
    %v97 = vld [vmem:[#allocation5 + $0x58] sm:$0xff]
    %v98 = vld [vmem:[#allocation5 + $0x60] sm:$0xff]
    %v99 = vld [vmem:[#allocation5 + $0x68] sm:$0xff]
    %v100 = vld [vmem:[#allocation5 + $0x70] sm:$0xff]
    %v101 = vld [vmem:[#allocation5 + $0x78] sm:$0xff]
    %v102 = vld [vmem:[#allocation7] sm:$0xf]
    %v104 = vperm.slane %v102, 0
    %v105 = vperm.slane %v102, 1
    %v106 = vperm.slane %v102, 2
    %v107 = vperm.slane %v102, 3
    %v128 = vunpack.c.l.b16 %v86
    %v129 = vunpack.c.h.b16 %v86
    %v130 = vunpack.c.l.b16 %v87
    %v131 = vunpack.c.h.b16 %v87
    %v132 = vunpack.c.l.b16 %v88
    %v133 = vunpack.c.h.b16 %v88
    %v134 = vunpack.c.l.b16 %v89
    %v135 = vunpack.c.h.b16 %v89
    %v136 = vunpack.c.l.b16 %v90
    %v137 = vunpack.c.h.b16 %v90
    %v138 = vunpack.c.l.b16 %v91
    %v139 = vunpack.c.h.b16 %v91
    %v140 = vunpack.c.l.b16 %v92
    %v141 = vunpack.c.h.b16 %v92
    %v142 = vunpack.c.l.b16 %v93
    %v143 = vunpack.c.h.b16 %v93
    %v144 = vunpack.c.l.b16 %v94
    %v145 = vunpack.c.h.b16 %v94
    %v146 = vunpack.c.l.b16 %v95
    %v147 = vunpack.c.h.b16 %v95
    %v148 = vunpack.c.l.b16 %v96
    %v149 = vunpack.c.h.b16 %v96
    %v150 = vunpack.c.l.b16 %v97
    %v151 = vunpack.c.h.b16 %v97
    %v152 = vunpack.c.l.b16 %v98
    %v153 = vunpack.c.h.b16 %v98
    %v154 = vunpack.c.l.b16 %v99
    %v155 = vunpack.c.h.b16 %v99
    %v156 = vunpack.c.l.b16 %v100
    %v157 = vunpack.c.h.b16 %v100
    %v158 = vunpack.c.l.b16 %v101
    %v159 = vunpack.c.h.b16 %v101
    %v160 = vpack.c.b16 %v132, %v128
    %v161 = vpack.c.b16 %v133, %v129
    %v162 = vpack.c.b16 %v134, %v130
    %v163 = vpack.c.b16 %v135, %v131
    %v164 = vpack.c.b16 %v140, %v136
    %v165 = vpack.c.b16 %v141, %v137
    %v166 = vpack.c.b16 %v142, %v138
    %v167 = vpack.c.b16 %v143, %v139
    %v168 = vpack.c.b16 %v148, %v144
    %v169 = vpack.c.b16 %v149, %v145
    %v170 = vpack.c.b16 %v150, %v146
    %v171 = vpack.c.b16 %v151, %v147
    %v172 = vpack.c.b16 %v156, %v152
    %v173 = vpack.c.b16 %v157, %v153
    %v174 = vpack.c.b16 %v158, %v154
    %v175 = vpack.c.b16 %v159, %v155
    %vm192 = vcmask 523264
    %v194 = vsel %vm192, %v85, 0
    %196 = vmatpush.bf16.msra.mxu0 0
    %197 = vmatpush.bf16.msra.mxu0 0
    %198 = vmatpush.bf16.msra.mxu0 0
    %199 = vmatpush.bf16.msra.mxu0 0
    %200 = vmatpush.bf16.msra.mxu0 %v172
    %201 = vmatpush.bf16.msra.mxu0 %v168
    %202 = vmatpush.bf16.msra.mxu0 %v164
    %203 = vmatpush.bf16.msra.mxu0 %v160
    %204 = vmatmul.bf16.gmra.mxu0 %v194
    %v205 = vpop.f32.mrf.mxu0
    %v206 = vadd.f32 %v104, %v205
    %v207 = vpop.f32.mrf.mxu0
    %v208 = vadd.f32 %v104, %v207
    %209 = vdwg.mxu0
    %210 = vmatpush.bf16.msra.mxu0 0
    %211 = vmatpush.bf16.msra.mxu0 0
    %212 = vmatpush.bf16.msra.mxu0 0
    %213 = vmatpush.bf16.msra.mxu0 0
    %214 = vmatpush.bf16.msra.mxu0 %v173
    %215 = vmatpush.bf16.msra.mxu0 %v169
    %216 = vmatpush.bf16.msra.mxu0 %v165
    %217 = vmatpush.bf16.msra.mxu0 %v161
    %218 = vmatmul.bf16.gmra.mxu0 %v194
    %v219 = vpop.f32.mrf.mxu0
    %v220 = vadd.f32 %v105, %v219
    %v221 = vpop.f32.mrf.mxu0
    %v222 = vadd.f32 %v105, %v221
    %223 = vdwg.mxu0
    %224 = vmatpush.bf16.msra.mxu0 0
    %225 = vmatpush.bf16.msra.mxu0 0
    %226 = vmatpush.bf16.msra.mxu0 0
    %227 = vmatpush.bf16.msra.mxu0 0
    %228 = vmatpush.bf16.msra.mxu0 %v174
    %229 = vmatpush.bf16.msra.mxu0 %v170
    %230 = vmatpush.bf16.msra.mxu0 %v166
    %231 = vmatpush.bf16.msra.mxu0 %v162
    %232 = vmatmul.bf16.gmra.mxu0 %v194
    %v233 = vpop.f32.mrf.mxu0
    %v234 = vadd.f32 %v106, %v233
    %v235 = vpop.f32.mrf.mxu0
    %v236 = vadd.f32 %v106, %v235
    %237 = vdwg.mxu0
    %238 = vmatpush.bf16.msra.mxu0 0
    %239 = vmatpush.bf16.msra.mxu0 0
    %240 = vmatpush.bf16.msra.mxu0 0
    %241 = vmatpush.bf16.msra.mxu0 0
    %242 = vmatpush.bf16.msra.mxu0 %v175
    %243 = vmatpush.bf16.msra.mxu0 %v171
    %244 = vmatpush.bf16.msra.mxu0 %v167
    %245 = vmatpush.bf16.msra.mxu0 %v163
    %246 = vmatmul.bf16.gmra.mxu0 %v194
    %v247 = vpop.f32.mrf.mxu0
    %v248 = vadd.f32 %v107, %v247
    %v249 = vpop.f32.mrf.mxu0
    %v250 = vadd.f32 %v107, %v249
    %251 = vdwg.mxu0
    %v252 = vpack.c.bf16 %v208, %v206
    %v253 = vpack.c.bf16 %v222, %v220
    %v254 = vpack.c.bf16 %v236, %v234
    %v255 = vpack.c.bf16 %v250, %v248
    %v256 = vld [vmem:[#allocation8] sm:$0xf]
    %v257 = vld [vmem:[#allocation8 + $0x4] sm:$0xf]
    %v258 = vld [vmem:[#allocation8 + $0x8] sm:$0xf]
    %v259 = vld [vmem:[#allocation8 + $0xc] sm:$0xf]
    %v260 = vld [vmem:[#allocation8 + $0x10] sm:$0xf]
    %v261 = vld [vmem:[#allocation8 + $0x14] sm:$0xf]
    %v262 = vld [vmem:[#allocation8 + $0x18] sm:$0xf]
    %v263 = vld [vmem:[#allocation8 + $0x1c] sm:$0xf]
    %v264 = vld [vmem:[#allocation8 + $0x20] sm:$0xf]
    %v265 = vld [vmem:[#allocation8 + $0x24] sm:$0xf]
    %v266 = vld [vmem:[#allocation8 + $0x28] sm:$0xf]
    %v267 = vld [vmem:[#allocation8 + $0x2c] sm:$0xf]
    %v268 = vld [vmem:[#allocation8 + $0x30] sm:$0xf]
    %v269 = vld [vmem:[#allocation8 + $0x34] sm:$0xf]
    %v270 = vld [vmem:[#allocation8 + $0x38] sm:$0xf]
    %v271 = vld [vmem:[#allocation8 + $0x3c] sm:$0xf]
    %v272 = vld [vmem:[#allocation8 + $0x40] sm:$0xf]
    %v273 = vld [vmem:[#allocation8 + $0x44] sm:$0xf]
    %v274 = vld [vmem:[#allocation8 + $0x48] sm:$0xf]
    %v275 = vld [vmem:[#allocation8 + $0x4c] sm:$0xf]
    %v276 = vld [vmem:[#allocation8 + $0x50] sm:$0xf]
    %v277 = vld [vmem:[#allocation8 + $0x54] sm:$0xf]
    %v278 = vld [vmem:[#allocation8 + $0x58] sm:$0xf]
    %v279 = vld [vmem:[#allocation8 + $0x5c] sm:$0xf]
    %v280 = vld [vmem:[#allocation8 + $0x60] sm:$0xf]
    %v281 = vld [vmem:[#allocation8 + $0x64] sm:$0xf]
    %v282 = vld [vmem:[#allocation8 + $0x68] sm:$0xf]
    %v283 = vld [vmem:[#allocation8 + $0x6c] sm:$0xf]
    %v284 = vld [vmem:[#allocation8 + $0x70] sm:$0xf]
    %v285 = vld [vmem:[#allocation8 + $0x74] sm:$0xf]
    %v286 = vld [vmem:[#allocation8 + $0x78] sm:$0xf]
    %v287 = vld [vmem:[#allocation8 + $0x7c] sm:$0xf]
    %v288 = vld [vmem:[#allocation8 + $0x80] sm:$0xf]
    %v289 = vld [vmem:[#allocation8 + $0x84] sm:$0xf]
    %v290 = vld [vmem:[#allocation8 + $0x88] sm:$0xf]
    %v291 = vld [vmem:[#allocation8 + $0x8c] sm:$0xf]
    %v292 = vld [vmem:[#allocation8 + $0x90] sm:$0xf]
    %v293 = vld [vmem:[#allocation8 + $0x94] sm:$0xf]
    %v294 = vld [vmem:[#allocation8 + $0x98] sm:$0xf]
    %v295 = vld [vmem:[#allocation8 + $0x9c] sm:$0xf]
    %v296 = vld [vmem:[#allocation8 + $0xa0] sm:$0xf]
    %v297 = vld [vmem:[#allocation8 + $0xa4] sm:$0xf]
    %v298 = vld [vmem:[#allocation8 + $0xa8] sm:$0xf]
    %v299 = vld [vmem:[#allocation8 + $0xac] sm:$0xf]
    %v300 = vld [vmem:[#allocation8 + $0xb0] sm:$0xf]
    %v301 = vld [vmem:[#allocation8 + $0xb4] sm:$0xf]
    %v302 = vld [vmem:[#allocation8 + $0xb8] sm:$0xf]
    %v303 = vld [vmem:[#allocation8 + $0xbc] sm:$0xf]
    %v304 = vld [vmem:[#allocation8 + $0xc0] sm:$0xf]
    %v305 = vld [vmem:[#allocation8 + $0xc4] sm:$0xf]
    %v306 = vld [vmem:[#allocation8 + $0xc8] sm:$0xf]
    %v307 = vld [vmem:[#allocation8 + $0xcc] sm:$0xf]
    %v308 = vld [vmem:[#allocation8 + $0xd0] sm:$0xf]
    %v309 = vld [vmem:[#allocation8 + $0xd4] sm:$0xf]
    %v310 = vld [vmem:[#allocation8 + $0xd8] sm:$0xf]
    %v311 = vld [vmem:[#allocation8 + $0xdc] sm:$0xf]
    %v312 = vld [vmem:[#allocation8 + $0xe0] sm:$0xf]
    %v313 = vld [vmem:[#allocation8 + $0xe4] sm:$0xf]
    %v314 = vld [vmem:[#allocation8 + $0xe8] sm:$0xf]
    %v315 = vld [vmem:[#allocation8 + $0xec] sm:$0xf]
    %v316 = vld [vmem:[#allocation8 + $0xf0] sm:$0xf]
    %v317 = vld [vmem:[#allocation8 + $0xf4] sm:$0xf]
    %v318 = vld [vmem:[#allocation8 + $0xf8] sm:$0xf]
    %v319 = vld [vmem:[#allocation8 + $0xfc] sm:$0xf]
    %v320 = vld [vmem:[%s4] sm:$0x1]
    %v322 = vperm.slane %v320, 0
    %v388 = vunpack.c.l.b16 %v256
    %v389 = vunpack.c.l.b16 %v257
    %v390 = vunpack.c.l.b16 %v258
    %v391 = vunpack.c.l.b16 %v259
    %v392 = vunpack.c.l.b16 %v260
    %v393 = vunpack.c.l.b16 %v261
    %v394 = vunpack.c.l.b16 %v262
    %v395 = vunpack.c.l.b16 %v263
    %v396 = vunpack.c.l.b16 %v264
    %v397 = vunpack.c.l.b16 %v265
    %v398 = vunpack.c.l.b16 %v266
    %v399 = vunpack.c.l.b16 %v267
    %v400 = vunpack.c.l.b16 %v268
    %v401 = vunpack.c.l.b16 %v269
    %v402 = vunpack.c.l.b16 %v270
    %v403 = vunpack.c.l.b16 %v271
    %v404 = vunpack.c.l.b16 %v272
    %v405 = vunpack.c.l.b16 %v273
    %v406 = vunpack.c.l.b16 %v274
    %v407 = vunpack.c.l.b16 %v275
    %v408 = vunpack.c.l.b16 %v276
    %v409 = vunpack.c.l.b16 %v277
    %v410 = vunpack.c.l.b16 %v278
    %v411 = vunpack.c.l.b16 %v279
    %v412 = vunpack.c.l.b16 %v280
    %v413 = vunpack.c.l.b16 %v281
    %v414 = vunpack.c.l.b16 %v282
    %v415 = vunpack.c.l.b16 %v283
    %v416 = vunpack.c.l.b16 %v284
    %v417 = vunpack.c.l.b16 %v285
    %v418 = vunpack.c.l.b16 %v286
    %v419 = vunpack.c.l.b16 %v287
    %v420 = vunpack.c.l.b16 %v288
    %v421 = vunpack.c.l.b16 %v289
    %v422 = vunpack.c.l.b16 %v290
    %v423 = vunpack.c.l.b16 %v291
    %v424 = vunpack.c.l.b16 %v292
    %v425 = vunpack.c.l.b16 %v293
    %v426 = vunpack.c.l.b16 %v294
    %v427 = vunpack.c.l.b16 %v295
    %v428 = vunpack.c.l.b16 %v296
    %v429 = vunpack.c.l.b16 %v297
    %v430 = vunpack.c.l.b16 %v298
    %v431 = vunpack.c.l.b16 %v299
    %v432 = vunpack.c.l.b16 %v300
    %v433 = vunpack.c.l.b16 %v301
    %v434 = vunpack.c.l.b16 %v302
    %v435 = vunpack.c.l.b16 %v303
    %v436 = vunpack.c.l.b16 %v304
    %v437 = vunpack.c.l.b16 %v305
    %v438 = vunpack.c.l.b16 %v306
    %v439 = vunpack.c.l.b16 %v307
    %v440 = vunpack.c.l.b16 %v308
    %v441 = vunpack.c.l.b16 %v309
    %v442 = vunpack.c.l.b16 %v310
    %v443 = vunpack.c.l.b16 %v311
    %v444 = vunpack.c.l.b16 %v312
    %v445 = vunpack.c.l.b16 %v313
    %v446 = vunpack.c.l.b16 %v314
    %v447 = vunpack.c.l.b16 %v315
    %v448 = vunpack.c.l.b16 %v316
    %v449 = vunpack.c.l.b16 %v317
    %v450 = vunpack.c.l.b16 %v318
    %v451 = vunpack.c.l.b16 %v319
    %v452 = vpack.c.b16 %v389, %v388
    %v453 = vpack.c.b16 %v391, %v390
    %v454 = vpack.c.b16 %v393, %v392
    %v455 = vpack.c.b16 %v395, %v394
    %v456 = vpack.c.b16 %v397, %v396
    %v457 = vpack.c.b16 %v399, %v398
    %v458 = vpack.c.b16 %v401, %v400
    %v459 = vpack.c.b16 %v403, %v402
    %v460 = vpack.c.b16 %v405, %v404
    %v461 = vpack.c.b16 %v407, %v406
    %v462 = vpack.c.b16 %v409, %v408
    %v463 = vpack.c.b16 %v411, %v410
    %v464 = vpack.c.b16 %v413, %v412
    %v465 = vpack.c.b16 %v415, %v414
    %v466 = vpack.c.b16 %v417, %v416
    %v467 = vpack.c.b16 %v419, %v418
    %v468 = vpack.c.b16 %v421, %v420
    %v469 = vpack.c.b16 %v423, %v422
    %v470 = vpack.c.b16 %v425, %v424
    %v471 = vpack.c.b16 %v427, %v426
    %v472 = vpack.c.b16 %v429, %v428
    %v473 = vpack.c.b16 %v431, %v430
    %v474 = vpack.c.b16 %v433, %v432
    %v475 = vpack.c.b16 %v435, %v434
    %v476 = vpack.c.b16 %v437, %v436
    %v477 = vpack.c.b16 %v439, %v438
    %v478 = vpack.c.b16 %v441, %v440
    %v479 = vpack.c.b16 %v443, %v442
    %v480 = vpack.c.b16 %v445, %v444
    %v481 = vpack.c.b16 %v447, %v446
    %v482 = vpack.c.b16 %v449, %v448
    %v483 = vpack.c.b16 %v451, %v450
    %516 = vmatpush.bf16.msra.mxu0 %v459
    %517 = vmatpush.bf16.msra.mxu0 %v458
    %518 = vmatpush.bf16.msra.mxu0 %v457
    %519 = vmatpush.bf16.msra.mxu0 %v456
    %520 = vmatpush.bf16.msra.mxu0 %v455
    %521 = vmatpush.bf16.msra.mxu0 %v454
    %522 = vmatpush.bf16.msra.mxu0 %v453
    %523 = vmatpush.bf16.msra.mxu0 %v452
    %524 = vmatmul.bf16.gmra.mxu0 %v252
    %v525 = vpop.f32.mrf.mxu0
    %v526 = vadd.f32 %v322, %v525
    %v527 = vpop.f32.mrf.mxu0
    %v528 = vadd.f32 %v322, %v527
    %529 = vdwg.mxu0
    %530 = vmatpush.bf16.msra.mxu0 %v467
    %531 = vmatpush.bf16.msra.mxu0 %v466
    %532 = vmatpush.bf16.msra.mxu0 %v465
    %533 = vmatpush.bf16.msra.mxu0 %v464
    %534 = vmatpush.bf16.msra.mxu0 %v463
    %535 = vmatpush.bf16.msra.mxu0 %v462
    %536 = vmatpush.bf16.msra.mxu0 %v461
    %537 = vmatpush.bf16.msra.mxu0 %v460
    %538 = vmatmul.bf16.gmra.mxu0 %v253
    %v539 = vpop.f32.mrf.mxu0
    %v540 = vadd.f32 %v526, %v539
    %v541 = vpop.f32.mrf.mxu0
    %v542 = vadd.f32 %v528, %v541
    %543 = vdwg.mxu0
    %544 = vmatpush.bf16.msra.mxu0 %v475
    %545 = vmatpush.bf16.msra.mxu0 %v474
    %546 = vmatpush.bf16.msra.mxu0 %v473
    %547 = vmatpush.bf16.msra.mxu0 %v472
    %548 = vmatpush.bf16.msra.mxu0 %v471
    %549 = vmatpush.bf16.msra.mxu0 %v470
    %550 = vmatpush.bf16.msra.mxu0 %v469
    %551 = vmatpush.bf16.msra.mxu0 %v468
    %552 = vmatmul.bf16.gmra.mxu0 %v254
    %v553 = vpop.f32.mrf.mxu0
    %v554 = vadd.f32 %v540, %v553
    %v555 = vpop.f32.mrf.mxu0
    %v556 = vadd.f32 %v542, %v555
    %557 = vdwg.mxu0
    %558 = vmatpush.bf16.msra.mxu0 %v483
    %559 = vmatpush.bf16.msra.mxu0 %v482
    %560 = vmatpush.bf16.msra.mxu0 %v481
    %561 = vmatpush.bf16.msra.mxu0 %v480
    %562 = vmatpush.bf16.msra.mxu0 %v479
    %563 = vmatpush.bf16.msra.mxu0 %v478
    %564 = vmatpush.bf16.msra.mxu0 %v477
    %565 = vmatpush.bf16.msra.mxu0 %v476
    %566 = vmatmul.bf16.gmra.mxu0 %v255
    %v567 = vpop.f32.mrf.mxu0
    %v568 = vadd.f32 %v554, %v567
    %v569 = vpop.f32.mrf.mxu0
    %v570 = vadd.f32 %v556, %v569
    %571 = vdwg.mxu0
    %572 = vst [vmem:[#allocation10] sm:$0xff] %v568
    %573 = vst [vmem:[#allocation10 + $0x8] sm:$0xff] %v570
    // Predicated region
    $region38: #{mlp_forward.1} parent=1 // pred_check
      _
    $region39: #{mlp_forward.1} parent=1 // pred_check_branch
      %575 = sbr.rel (0) target = $region41
    $region40: #{mlp_forward.1} parent=1 // pred_region
      %577 = vsyncadd [#allocation4], 0
      %s578 = sshll.u32 [#allocation10], 4
      %s579 = int_to_ptr.vmem [resolvable:$true] %s578
      %s580 = sshll.u32 %s5, 4
      %s581 = int_to_ptr.hbm [resolvable:$true] %s580
      %586 = dma.vmem_to_hbm [thread:$0]  %s579, 256, %s581, [#allocation4], 128, 128, 8
    $region41: #{mlp_forward.1} parent=1 // pred_fallthru
      _
    // Predicated region
    $region42: #{mlp_forward.1} parent=1 // pred_check
      _
    $region43: #{mlp_forward.1} parent=1 // pred_check_branch
      %588 = sbr.rel (0) target = $region45
    $region44: #{mlp_forward.1} parent=1 // pred_region
      %590 = dma.done [#allocation4], 256
    $region45: #{mlp_forward.1} parent=1 // pred_fallthru
      _
    %591 = vsyncpa [#allocation3], 1
    %592 = vsyncpa [#allocation6], 1
    %593 = vsyncpa [#allocation9], 1
    %594 = vsyncpa [#allocation4], 1

</llo_original>
